<compile_context>
chip_gen: v7x
topology: tpu7x:2x2x1
jax: 0.10.0
libtpu: 0.0.40
codegen_flags: <defaults>
</compile_context>

<pallas_src>
import jax
import jax.numpy as jnp
from jax.experimental import pallas as pl
from jax.experimental.pallas import tpu as pltpu


def _store_partial(sq, out_ref):
    """Fold a (tm, tn) squared-error tile into a lane-dense (8, out_tn) partial sum.

    Lane-group folds are static 128-aligned slices (pure vreg adds, no XLU) and
    the sublane fold is a grouped reshape — all VALU work, which has slack since
    the MXU/DMA dominate.  The scalar reduce and /(N*M) happen in the wrapper.
    """
    tm, tn = sq.shape
    if tn % 128 == 0 and tn > 128:
        acc = sq[:, 0:128]
        for c in range(1, tn // 128):
            acc = acc + sq[:, c * 128:(c + 1) * 128]
    else:
        acc = sq
    w = acc.shape[1]
    out_ref[...] = jnp.sum(acc.reshape(tm // 8, 8, w), axis=0)


def eigen_loss_kernel_dedup(r_slab_ref, s_ref, e_ref, out_ref):
    """tn == M path: the R row slab IS the elementwise tile (single R stream)."""
    r_slab = r_slab_ref[...]                                    # bf16 (tm, M)
    prod = jnp.dot(r_slab, s_ref[...], preferred_element_type=jnp.float32)
    diff = prod - e_ref[...] * r_slab.astype(jnp.float32)
    _store_partial(diff * diff, out_ref)


def eigen_loss_kernel_tiled(r_slab_ref, s_ref, r_tile_ref, e_ref, out_ref):
    """tn < M path: separate (tm, tn) R tile for the elementwise term."""
    # TODO(synk): retry replacing r_tile_ref with a lane-aligned dynamic slice of
    # the resident slab (pl.ds(pl.multiple_of(pl.program_id(1) * tn, 128), tn))
    # to drop this duplicate stream in the general tiled case.
    prod = jnp.dot(r_slab_ref[...], s_ref[...], preferred_element_type=jnp.float32)
    diff = prod - e_ref[...] * r_tile_ref[...].astype(jnp.float32)
    _store_partial(diff * diff, out_ref)


def eigenvalue_net_loss(R, S, e, *, tm=None, tn=None):
    """Computes mean((R @ S - e * R)**2) with one Pallas kernel + wrapper reduce."""
    N, M = R.shape
    assert S.shape == (M, M) and e.shape == (N, 1)

    # Column tile: full width when the double-buffered bf16 S slab fits the
    # budget (enables the R-dedup kernel); otherwise a lane-aligned 512 tile.
    if tn is None:
        tn = M if (4 * M * M <= (24 << 20) or M % 512 != 0) else 512
    tn = min(tn, M)
    # Row tile: large (512) so the re-streamed S slab is amortized on the
    # 128 MiB-VMEM parts; clamped to N, and the VMEM limit below is capped for v7x.
    if tm is None:
        tm = min(512, N)
    tm = min(tm, N)

    assert N % tm == 0 and M % tn == 0, "shapes must tile evenly"
    assert tm % 8 == 0, "row tile must be a multiple of 8 sublanes"
    assert tn % 128 == 0 or tn == M, "column tile must be lane aligned"
    # TODO(synk): pad N up to a multiple of 8 instead of asserting for odd row counts.

    grid_i, grid_j = N // tm, M // tn

    # v7x megacore: guarantee >= 2 grid tiles so the two TensorCores both get work.
    if grid_i * grid_j == 1 and N >= 16 and (N // 2) % 8 == 0:
        tm = N // 2
        grid_i = N // tm

    dedup = (tn == M)
    out_tn = 128 if tn % 128 == 0 else tn

    # bf16 MXU operands: R is a 0/1 ratings matrix (exact in bf16); S picks up
    # ~2^-8 relative rounding; accumulation stays f32 on the MXU.
    R_bf = R.astype(jnp.bfloat16)
    S_bf = S.astype(jnp.bfloat16)
    e_f = e.astype(jnp.float32)

    # VMEM: double-buffered bf16 input streams + f32 output tiles + the f32
    # dot-result / R-cast / diff / square temporaries; capped at 48 MiB so the
    # 64 MiB v7x part keeps headroom for compiler scratch (128 MiB on v5e/v6e).
    vmem_est = (
        2 * tm * M * 2                        # R row slab (bf16, double-buffered)
        + 2 * M * tn * 2                      # S column slab (bf16)
        + (0 if dedup else 2 * tm * tn * 2)   # duplicate R tile (tn < M only)
        + 2 * tm * 4                          # eigen weights
        + 2 * 8 * out_tn * 4                  # partial-sum output
        + 4 * tm * max(M, tn) * 4             # f32 temporaries in the body
    )
    vmem_limit = int(min(max(vmem_est + (8 << 20), 16 << 20), 48 << 20))

    cost = pl.CostEstimate(
        flops=2 * N * M * M + 3 * N * M,
        transcendentals=0,
        bytes_accessed=(
            N * M * 2                                   # R slab, streamed once
            + grid_i * M * M * 2                        # S re-streamed per row slab
            + (0 if dedup else N * M * 2)               # duplicate R tile stream
            + N * 4                                     # eigen weights
            + grid_i * (M // tn) * 8 * out_tn * 4       # lane-dense partial sums
        ),
    )

    r_slab_spec = pl.BlockSpec((tm, M), lambda i, j: (i, 0))      # matmul LHS / dedup tile
    s_spec = pl.BlockSpec((M, tn), lambda i, j: (0, j))           # S column slab
    e_spec = pl.BlockSpec((tm, 1), lambda i, j: (i, 0))           # eigen weights
    out_spec = pl.BlockSpec((8, out_tn), lambda i, j: (i, j))     # lane-dense partials

    if dedup:
        kernel = eigen_loss_kernel_dedup
        in_specs = [r_slab_spec, s_spec, e_spec]
        args = (R_bf, S_bf, e_f)
    else:
        kernel = eigen_loss_kernel_tiled
        in_specs = [r_slab_spec, s_spec,
                    pl.BlockSpec((tm, tn), lambda i, j: (i, j)), e_spec]
        args = (R_bf, S_bf, R_bf, e_f)

    partials = pl.pallas_call(
        kernel,
        out_shape=jax.ShapeDtypeStruct((grid_i * 8, (M // tn) * out_tn), jnp.float32),
        grid_spec=pltpu.PrefetchScalarGridSpec(
            num_scalar_prefetch=0,
            grid=(grid_i, M // tn),
            in_specs=in_specs,
            out_specs=out_spec,
        ),
        compiler_params=pltpu.CompilerParams(
            dimension_semantics=("parallel", "parallel"),
            vmem_limit_bytes=vmem_limit,
        ),
        cost_estimate=cost,
    )(*args)

    # Tiny scalar glue outside the kernel: sum of lane-dense partials -> mean.
    return jnp.sum(partials) / (N * M)


if __name__ == "__main__":
    # Small shapes consistent with the module: N users x M items ratings,
    # M x M item-item similarity (from embedding_dim=50 SVD factors),
    # N x 1 learnable "eigenvalue" embedding initialized Uniform(0, 0.01).
    N, M, EMB = 32, 256, 50

    key = jax.random.PRNGKey(0)
    k1, k2, k3 = jax.random.split(key, 3)

    # Sparse-ish binary ratings matrix (the [1:, 1:] dense slice in the module);
    # 0/1 values are exactly representable in bf16.
    R = (jax.random.uniform(k1, (N, M)) < 0.1).astype(jnp.float32)

    # sim_matrix = item_embeddings @ item_embeddings.T (PureSVD with dim=50).
    item_emb = jax.random.normal(k2, (M, EMB), dtype=jnp.float32)
    S = item_emb @ item_emb.T

    # eigen.weight.data.uniform_(0, 0.01), shape (N, 1).
    e = jax.random.uniform(k3, (N, 1), dtype=jnp.float32) * 0.01

    # TODO(synk): the Adam training loop in __init__ is host-side autograd-driven
    # optimization; only the forward loss is implemented as a kernel.

    loss = eigenvalue_net_loss(R, S, e)
    jax.block_until_ready(loss)

    # Correctness check against a full-precision pure-JAX reference of the
    # PyTorch forward; rtol accounts for the bf16 S operand fed to the MXU.
    ref = jnp.mean((jnp.dot(R, S, precision=jax.lax.Precision.HIGHEST) - e * R) ** 2)
    assert jnp.allclose(loss, ref, rtol=2e-2, atol=1e-3), (loss, ref)

    print("KERNEL_OK")
</pallas_src>

<mosaic_0001>
module attributes {stable_mosaic.version = 11 : i64} {
  func.func @eigen_loss_kernel_dedup(%arg0: i32, %arg1: i32, %arg2: memref<16x256xbf16, #tpu.memory_space<vmem>>, %arg3: memref<256x256xbf16, #tpu.memory_space<vmem>>, %arg4: memref<16x1xf32, #tpu.memory_space<vmem>>, %arg5: memref<8x128xf32, #tpu.memory_space<vmem>>) attributes {dimension_semantics = [#tpu.dimension_semantics<parallel>, #tpu.dimension_semantics<parallel>], iteration_bounds = array<i64: 2, 1>, scalar_prefetch = 0 : i64, scratch_operands = 0 : i64, tpu.core_type = #tpu.core_type<tc>, window_params = [{transform_indices = @transform_0, window_bounds = array<i64: 16, 256>}, {transform_indices = @transform_1, window_bounds = array<i64: 256, 256>}, {transform_indices = @transform_2, window_bounds = array<i64: 16, 1>}, {transform_indices = @transform_3, window_bounds = array<i64: 8, 128>}]} {
    %c0 = arith.constant 0 : index
    %c0_0 = arith.constant 0 : index
    %0 = vector.load %arg2[%c0, %c0_0] : memref<16x256xbf16, #tpu.memory_space<vmem>>, vector<16x256xbf16>
    %c0_1 = arith.constant 0 : index
    %c0_2 = arith.constant 0 : index
    %1 = vector.load %arg3[%c0_1, %c0_2] : memref<256x256xbf16, #tpu.memory_space<vmem>>, vector<256x256xbf16>
    %cst = arith.constant dense<0.000000e+00> : vector<16x256xf32>
    %2 = tpu.matmul %0, %1, %cst {dimension_numbers = #tpu.dot_dimension_numbers<[1], [0], [0], [1], [0, 0, 1, 1], [], []>} : vector<16x256xbf16>, vector<256x256xbf16>, vector<16x256xf32> -> vector<16x256xf32>
    %c0_3 = arith.constant 0 : index
    %c0_4 = arith.constant 0 : index
    %3 = vector.load %arg4[%c0_3, %c0_4] : memref<16x1xf32, #tpu.memory_space<vmem>>, vector<16x1xf32>
    %4 = arith.extf %0 : vector<16x256xbf16> to vector<16x256xf32>
    %5 = vector.broadcast %3 : vector<16x1xf32> to vector<16x256xf32>
    %6 = arith.mulf %5, %4 : vector<16x256xf32>
    %7 = arith.subf %2, %6 : vector<16x256xf32>
    %8 = arith.mulf %7, %7 : vector<16x256xf32>
    %9 = vector.extract_strided_slice %8 {offsets = [0, 0], sizes = [16, 128], strides = [1, 1]} : vector<16x256xf32> to vector<16x128xf32>
    %10 = vector.extract_strided_slice %8 {offsets = [0, 128], sizes = [16, 128], strides = [1, 1]} : vector<16x256xf32> to vector<16x128xf32>
    %11 = arith.addf %9, %10 : vector<16x128xf32>
    %12 = vector.shape_cast %11 : vector<16x128xf32> to vector<2x8x128xf32>
    %cst_5 = arith.constant dense<0.000000e+00> : vector<8x128xf32>
    %13 = vector.multi_reduction <add>, %12, %cst_5 [0] : vector<2x8x128xf32> to vector<8x128xf32>
    %c0_6 = arith.constant 0 : index
    %c0_7 = arith.constant 0 : index
    %14 = vector.load %arg5[%c0_6, %c0_7] : memref<8x128xf32, #tpu.memory_space<vmem>>, vector<8x128xf32>
    tpu.vector_store %arg5[%c0_6, %c0_7], %13 {strides = array<i32>} : memref<8x128xf32, #tpu.memory_space<vmem>>, vector<8x128xf32>,
    return
  }
  func.func @transform_0(%arg0: i32, %arg1: i32) -> (i32, i32) {
    %c0_i32 = arith.constant 0 : i32
    %c0_i32_0 = arith.constant 0 : i32
    return %arg0, %c0_i32 : i32, i32
  }
  func.func @transform_1(%arg0: i32, %arg1: i32) -> (i32, i32) {
    %c0_i32 = arith.constant 0 : i32
    %c0_i32_0 = arith.constant 0 : i32
    return %c0_i32, %arg1 : i32, i32
  }
  func.func @transform_2(%arg0: i32, %arg1: i32) -> (i32, i32) {
    %c0_i32 = arith.constant 0 : i32
    %c0_i32_0 = arith.constant 0 : i32
    return %arg0, %c0_i32 : i32, i32
  }
  func.func @transform_3(%arg0: i32, %arg1: i32) -> (i32, i32) {
    %c0_i32 = arith.constant 0 : i32
    return %arg0, %arg1 : i32, i32
  }
}

</mosaic_0001>

<llo_original>
// kernel: tpu_custom_call.1
$region0: #{tpu_custom_call.1}
  #allocation0 [shape = 'u32[]', space=smem, size = 0x4, offset = 0x4, fixed_abs, tag = 'smem constant byte address 0x4 - core index']
  #allocation1 [shape = 'u32[144,128]{1,0:T(1,128)}', space=vmem, size = 0x12000, scoped, tag = 'internal scratch']
  %s0 = inlined_call_operand.vmem [shape: bf16[32,256], index: 0, kind: input, shape index: {}]
  %s1 = inlined_call_operand.hbm [shape: bf16[256,256], index: 1, kind: input, shape index: {}]
  %s2 = inlined_call_operand.vmem [shape: f32[32,1], index: 2, kind: input, shape index: {}]
  %s3 = inlined_call_operand.hbm [shape: f32[16,128], index: 3, kind: output, shape index: {}]
  %s4 = sld [smem:[#allocation0]]
  $region49: #{tpu_custom_call.1} parent=0
    _
  %s6 = ssub.s32 1, %s4
  %s7 = scalar_select 0, %s6, %s4
  $region1: #{tpu_custom_call.1} parent=0
    #allocation2 [shape = 'u8[131072]{0}', space=vmem, size = 0x20000, scoped, tag = 'input window, operand 1, single buffered']
    #allocation3 [shape = 's32[2]{0}', space=sflag, size = 0x8, scoped, tag = 'scoped memory for tpu_custom_call.1']
    #allocation4 [shape = 's32[2]{0}', space=sflag, size = 0x8, scoped, tag = 'scoped memory for tpu_custom_call.1']
    #allocation5 [shape = 'u8[8192]{0}', space=vmem, size = 0x2000, scoped, tag = 'output window, operand 0']
    %8 = vsyncpa [#allocation3], 0
    %9 = vsyncpa [#allocation4], 0
    %s10 = scalar_lea.sflag [#allocation4], 1
    %11 = vsyncpa %s10, 0
    loop: start=0, step=1, limit=4
    $region2: #{tpu_custom_call.1} parent=1 // loop_pre_header
      _
    $region3: #{tpu_custom_call.1} parent=1 // loop_header
      %s13 = sphi 0, %s17
      %p14 = scmp.ge.s32.totalorder %s13, 4
      %s20 = sphi 0, %s32
      %s21 = sphi 0, %s28
      %s22 = sphi 0, %s20
      %s23 = sphi 0, %s21
      %s24 = sphi 0, %s22
      %s25 = sphi 0, %s23
      %s35 = sphi 0, %s37
      %s38 = sphi 0, %s35
      %s39 = sphi 0, %s38
      %s55 = sphi 0, %s39
      %s61 = sphi 0, %s63
      %s64 = sphi 0, %s61
      %s65 = sphi 0, %s64
      %s81 = sphi 0, %s65
      %s87 = sphi 0, %s89
      %s90 = sphi 0, %s87
      %s91 = sphi 0, %s90
      %s107 = sphi 0, %s91
      %s115 = sphi 0, %s117
      %s118 = sphi 0, %s115
      %s119 = sphi 0, %s118
      %s135 = sphi 0, %s119
    $region4: #{tpu_custom_call.1} parent=1 // loop_header_branch
      %16 = sbr.rel (%p14) target = $region8
    $region5: #{tpu_custom_call.1} parent=1 // loop_body
      %s18 = ssub.s32 %s13, 1
      %s19 = ssub.s32 %s13, 2
      %s26 = sadd.s32 1, %s21
      %p27 = scmp.ge.s32.totalorder %s26, 1
      %s28 = scalar_select %p27, 0, %s26
      %s29 = sadd.s32 1, %s20
      %s30 = scalar_select %p27, %s29, %s20
      %p31 = scmp.ge.s32.totalorder %s30, 2
      %s32 = scalar_select %p31, 0, %s30
      %s33 = ssub.s32 %s20, %s32
      %p34 = scmp.eq.s32.totalorder %s33, 0
      %s36 = sadd.s32 %s35, 1
      %s37 = scalar_select %p34, %s35, %s36
      %p40 = pneg %p34
      %p41 = scmp.eq.s32.totalorder %s13, 1
      %p42 = por %p40, %p41
      %p43 = scmp.ne.s32.totalorder %s35, %s38
      %p44 = scmp.eq.s32.totalorder %s13, 0
      %p45 = por %p43, %p44
      %p46 = scmp.ne.s32.totalorder %s35, %s38
      %p47 = scmp.eq.s32.totalorder %s18, 1
      %p48 = por %p46, %p47
      %p49 = scmp.ne.s32.totalorder %s38, %s39
      %p50 = scmp.eq.s32.totalorder %s18, 0
      %p51 = por %p49, %p50
      %p52 = scmp.ne.s32.totalorder %s38, %s39
      %p53 = scmp.eq.s32.totalorder %s19, 1
      %p54 = por %p52, %p53
      %p56 = scmp.ne.s32.totalorder %s39, %s55
      %p57 = scmp.eq.s32.totalorder %s19, 0
      %p58 = por %p56, %p57
      %s59 = ssub.s32 %s21, %s28
      %p60 = scmp.eq.s32.totalorder %s59, 0
      %s62 = sadd.s32 %s61, 1
      %s63 = scalar_select %p60, %s61, %s62
      %p66 = pneg %p60
      %p67 = scmp.eq.s32.totalorder %s13, 1
      %p68 = por %p66, %p67
      %p69 = scmp.ne.s32.totalorder %s61, %s64
      %p70 = scmp.eq.s32.totalorder %s13, 0
      %p71 = por %p69, %p70
      %p72 = scmp.ne.s32.totalorder %s61, %s64
      %p73 = scmp.eq.s32.totalorder %s18, 1
      %p74 = por %p72, %p73
      %p75 = scmp.ne.s32.totalorder %s64, %s65
      %p76 = scmp.eq.s32.totalorder %s18, 0
      %p77 = por %p75, %p76
      %p78 = scmp.ne.s32.totalorder %s64, %s65
      %p79 = scmp.eq.s32.totalorder %s19, 1
      %p80 = por %p78, %p79
      %p82 = scmp.ne.s32.totalorder %s65, %s81
      %p83 = scmp.eq.s32.totalorder %s19, 0
      %p84 = por %p82, %p83
      %s85 = ssub.s32 %s20, %s32
      %p86 = scmp.eq.s32.totalorder %s85, 0
      %s88 = sadd.s32 %s87, 1
      %s89 = scalar_select %p86, %s87, %s88
      %p92 = pneg %p86
      %p93 = scmp.eq.s32.totalorder %s13, 1
      %p94 = por %p92, %p93
      %p95 = scmp.ne.s32.totalorder %s87, %s90
      %p96 = scmp.eq.s32.totalorder %s13, 0
      %p97 = por %p95, %p96
      %p98 = scmp.ne.s32.totalorder %s87, %s90
      %p99 = scmp.eq.s32.totalorder %s18, 1
      %p100 = por %p98, %p99
      %p101 = scmp.ne.s32.totalorder %s90, %s91
      %p102 = scmp.eq.s32.totalorder %s18, 0
      %p103 = por %p101, %p102
      %p104 = scmp.ne.s32.totalorder %s90, %s91
      %p105 = scmp.eq.s32.totalorder %s19, 1
      %p106 = por %p104, %p105
      %p108 = scmp.ne.s32.totalorder %s91, %s107
      %p109 = scmp.eq.s32.totalorder %s19, 0
      %p110 = por %p108, %p109
      %s111 = ssub.s32 %s20, %s32
      %s112 = ssub.s32 %s21, %s28
      %s113 = sor.u32 %s111, %s112
      %p114 = scmp.eq.s32.totalorder %s113, 0
      %s116 = sadd.s32 %s115, 1
      %s117 = scalar_select %p114, %s115, %s116
      %p120 = pneg %p114
      %p121 = scmp.eq.s32.totalorder %s13, 1
      %p122 = por %p120, %p121
      %p123 = scmp.ne.s32.totalorder %s115, %s118
      %p124 = scmp.eq.s32.totalorder %s13, 0
      %p125 = por %p123, %p124
      %p126 = scmp.ne.s32.totalorder %s115, %s118
      %p127 = scmp.eq.s32.totalorder %s18, 1
      %p128 = por %p126, %p127
      %p129 = scmp.ne.s32.totalorder %s118, %s119
      %p130 = scmp.eq.s32.totalorder %s18, 0
      %p131 = por %p129, %p130
      %p132 = scmp.ne.s32.totalorder %s118, %s119
      %p133 = scmp.eq.s32.totalorder %s19, 1
      %p134 = por %p132, %p133
      %p136 = scmp.ne.s32.totalorder %s119, %s135
      %p137 = scmp.eq.s32.totalorder %s19, 0
      %p138 = por %p136, %p137
      %p139 = scmp.le.s32.totalorder 1, %s13
      %p140 = scmp.lt.s32.totalorder %s13, 3
      %p141 = pnand %p139, %p140
      %p142 = pneg %p141
      // Predicated region
      $region9: #{tpu_custom_call.1} parent=5 // pred_check
        _
      $region10: #{tpu_custom_call.1} parent=5 // pred_check_branch
        %144 = sbr.rel (%p141) target = $region12
      $region11: #{tpu_custom_call.1} parent=5 // pred_region
        %s145 = ssub.s32 %s13, 1
        // Predicated region
        $region13: #{tpu_custom_call.1} parent=11 // pred_check
          %p146 = pneg %p77
        $region14: #{tpu_custom_call.1} parent=11 // pred_check_branch
          %148 = sbr.rel (%p146) target = $region16
        $region15: #{tpu_custom_call.1} parent=11 // pred_region
          %s149 = smul.u32 2, %s23
          %s151 = ssub.s32 4096, 4096
          %152 = vsyncadd [#allocation3], %s151
          %s153 = smul.addr %s149, 64
          %s154 = scalar_lea.hbm %s1, %s153
          %s155 = sshll.u32 [#allocation2], 4
          %s156 = int_to_ptr.vmem [resolvable:$true] %s155
          %161 = dma.hbm_to_vmem [thread:$0]  %s154, 4096, %s156, [#allocation3], 128, 128, 8
        $region16: #{tpu_custom_call.1} parent=11 // pred_fallthru
          _
      $region12: #{tpu_custom_call.1} parent=5 // pred_fallthru
        _
      %p162 = scmp.lt.s32.totalorder %s13, 2
      // Predicated region
      $region17: #{tpu_custom_call.1} parent=5 // pred_check
        %p163 = pneg %p162
      $region18: #{tpu_custom_call.1} parent=5 // pred_check_branch
        %165 = sbr.rel (%p163) target = $region20
      $region19: #{tpu_custom_call.1} parent=5 // pred_region
        // Predicated region
        $region21: #{tpu_custom_call.1} parent=19 // pred_check
          %p166 = pneg %p45
        $region22: #{tpu_custom_call.1} parent=19 // pred_check_branch
          %168 = sbr.rel (%p166) target = $region24
        $region23: #{tpu_custom_call.1} parent=19 // pred_region
          %s169 = smul.u32 2, %s20
          %p170 = scmp.lt.s32.totalorder %s169, 3
          %s171 = scalar_select %p170, %s169, 3
          %s172 = smul.addr %s171, 2
          %s173 = smul.addr %s172, 4
          %s174 = scalar_lea.vmem %s0, %s173
          %s175 = smul.u32 2, %s20
        $region24: #{tpu_custom_call.1} parent=19 // pred_fallthru
          _
        // Predicated region
        $region25: #{tpu_custom_call.1} parent=19 // pred_check
          %p176 = pneg %p97
        $region26: #{tpu_custom_call.1} parent=19 // pred_check_branch
          %178 = sbr.rel (%p176) target = $region28
        $region27: #{tpu_custom_call.1} parent=19 // pred_region
          %s179 = smul.u32 2, %s20
          %p180 = scmp.lt.s32.totalorder %s179, 3
          %s181 = scalar_select %p180, %s179, 3
          %s182 = smul.addr %s181, 8
          %s183 = scalar_lea.vmem %s2, %s182
          %s184 = smul.u32 2, %s20
        $region28: #{tpu_custom_call.1} parent=19 // pred_fallthru
          _
      $region20: #{tpu_custom_call.1} parent=5 // pred_fallthru
        _
      %p185 = scmp.le.s32.totalorder 1, %s13
      %p186 = scmp.lt.s32.totalorder %s13, 3
      %p187 = pnand %p185, %p186
      %p188 = pneg %p187
      // Predicated region
      $region29: #{tpu_custom_call.1} parent=5 // pred_check
        _
      $region30: #{tpu_custom_call.1} parent=5 // pred_check_branch
        %190 = sbr.rel (%p187) target = $region32
      $region31: #{tpu_custom_call.1} parent=5 // pred_region
        %s191 = ssub.s32 %s13, 1
        // Predicated region
        $region33: #{tpu_custom_call.1} parent=31 // pred_check
          %p192 = pneg %p77
        $region34: #{tpu_custom_call.1} parent=31 // pred_check_branch
          %194 = sbr.rel (%p192) target = $region36
        $region35: #{tpu_custom_call.1} parent=31 // pred_region
          %195 = dma.done [#allocation3], 4096
        $region36: #{tpu_custom_call.1} parent=31 // pred_fallthru
          _
        %s196 = smul.u32 2, %s22
        %p197 = scmp.lt.s32.totalorder %s196, 3
        %s198 = scalar_select %p197, %s196, 3
        %s199 = smul.addr %s198, 2
        %s200 = smul.addr %s199, 4
        %s201 = scalar_lea.vmem %s0, %s200
        %p202 = pneg %p51
        %p203 = pneg %p48
        %p204 = pneg %p77
        %p205 = pneg %p74
        %s206 = smul.u32 2, %s22
        %p207 = scmp.lt.s32.totalorder %s206, 3
        %s208 = scalar_select %p207, %s206, 3
        %s209 = smul.addr %s208, 8
        %s210 = scalar_lea.vmem %s2, %s209
        %p211 = pneg %p103
        %p212 = pneg %p100
        %p213 = pneg %p131
        %p214 = pneg %p128
        %s215 = sand.u32 %s118, 1
        %s216 = scalar_lea.sflag [#allocation4], %s215
        %s217 = sand.u32 %s118, 1
        %s218 = smul.addr %s217, 8
        %s219 = scalar_lea.vmem [#allocation5], %s218
        %s220 = smul.u32 2, %s22
        %p221 = scmp.lt.s32.totalorder %s220, 3
        %s222 = scalar_select %p221, %s220, 3
        %s223 = smul.addr %s222, 2
        %s224 = smul.addr %s223, 4
        %s225 = scalar_lea.vmem %s0, %s224
        %s226 = smul.u32 2, %s22
        %s227 = smul.u32 2, %s23
        %s228 = smul.u32 2, %s22
        %p229 = scmp.lt.s32.totalorder %s228, 3
        %s230 = scalar_select %p229, %s228, 3
        %s231 = smul.addr %s230, 8
        %s232 = scalar_lea.vmem %s2, %s231
        %s233 = smul.u32 2, %s22
        %v234 = vld [vmem:[%s225] sm:$0xff]
        %v235 = vld [vmem:[%s225 + $0x8] sm:$0xff]
        %v236 = vld [vmem:[#allocation2] sm:$0xff]
        %v237 = vld [vmem:[#allocation2 + $0x8] sm:$0xff]
        %v238 = vld [vmem:[#allocation2 + $0x10] sm:$0xff]
        %v239 = vld [vmem:[#allocation2 + $0x18] sm:$0xff]
        %v240 = vld [vmem:[#allocation2 + $0x20] sm:$0xff]
        %v241 = vld [vmem:[#allocation2 + $0x28] sm:$0xff]
        %v242 = vld [vmem:[#allocation2 + $0x30] sm:$0xff]
        %v243 = vld [vmem:[#allocation2 + $0x38] sm:$0xff]
        %v244 = vld [vmem:[#allocation2 + $0x40] sm:$0xff]
        %v245 = vld [vmem:[#allocation2 + $0x48] sm:$0xff]
        %v246 = vld [vmem:[#allocation2 + $0x50] sm:$0xff]
        %v247 = vld [vmem:[#allocation2 + $0x58] sm:$0xff]
        %v248 = vld [vmem:[#allocation2 + $0x60] sm:$0xff]
        %v249 = vld [vmem:[#allocation2 + $0x68] sm:$0xff]
        %v250 = vld [vmem:[#allocation2 + $0x70] sm:$0xff]
        %v251 = vld [vmem:[#allocation2 + $0x78] sm:$0xff]
        %v252 = vld [vmem:[#allocation2 + $0x80] sm:$0xff]
        %v253 = vld [vmem:[#allocation2 + $0x88] sm:$0xff]
        %v254 = vld [vmem:[#allocation2 + $0x90] sm:$0xff]
        %v255 = vld [vmem:[#allocation2 + $0x98] sm:$0xff]
        %v256 = vld [vmem:[#allocation2 + $0xa0] sm:$0xff]
        %v257 = vld [vmem:[#allocation2 + $0xa8] sm:$0xff]
        %v258 = vld [vmem:[#allocation2 + $0xb0] sm:$0xff]
        %v259 = vld [vmem:[#allocation2 + $0xb8] sm:$0xff]
        %v260 = vld [vmem:[#allocation2 + $0xc0] sm:$0xff]
        %v261 = vld [vmem:[#allocation2 + $0xc8] sm:$0xff]
        %v262 = vld [vmem:[#allocation2 + $0xd0] sm:$0xff]
        %v263 = vld [vmem:[#allocation2 + $0xd8] sm:$0xff]
        %v264 = vld [vmem:[#allocation2 + $0xe0] sm:$0xff]
        %v265 = vld [vmem:[#allocation2 + $0xe8] sm:$0xff]
        %v266 = vld [vmem:[#allocation2 + $0xf0] sm:$0xff]
        %v267 = vld [vmem:[#allocation2 + $0xf8] sm:$0xff]
        %v270 = vunpack.c.l.b16 %v234
        %v271 = vunpack.c.h.b16 %v234
        %v272 = vunpack.c.l.b16 %v235
        %v273 = vunpack.c.h.b16 %v235
        %v274 = vpack.c.b16 %v272, %v270
        %v275 = vpack.c.b16 %v273, %v271
        %v310 = vunpack.c.l.b16 %v236
        %v311 = vunpack.c.h.b16 %v236
        %v312 = vunpack.c.l.b16 %v237
        %v313 = vunpack.c.h.b16 %v237
        %v314 = vunpack.c.l.b16 %v238
        %v315 = vunpack.c.h.b16 %v238
        %v316 = vunpack.c.l.b16 %v239
        %v317 = vunpack.c.h.b16 %v239
        %v318 = vunpack.c.l.b16 %v240
        %v319 = vunpack.c.h.b16 %v240
        %v320 = vunpack.c.l.b16 %v241
        %v321 = vunpack.c.h.b16 %v241
        %v322 = vunpack.c.l.b16 %v242
        %v323 = vunpack.c.h.b16 %v242
        %v324 = vunpack.c.l.b16 %v243
        %v325 = vunpack.c.h.b16 %v243
        %v326 = vunpack.c.l.b16 %v244
        %v327 = vunpack.c.h.b16 %v244
        %v328 = vunpack.c.l.b16 %v245
        %v329 = vunpack.c.h.b16 %v245
        %v330 = vunpack.c.l.b16 %v246
        %v331 = vunpack.c.h.b16 %v246
        %v332 = vunpack.c.l.b16 %v247
        %v333 = vunpack.c.h.b16 %v247
        %v334 = vunpack.c.l.b16 %v248
        %v335 = vunpack.c.h.b16 %v248
        %v336 = vunpack.c.l.b16 %v249
        %v337 = vunpack.c.h.b16 %v249
        %v338 = vunpack.c.l.b16 %v250
        %v339 = vunpack.c.h.b16 %v250
        %v340 = vunpack.c.l.b16 %v251
        %v341 = vunpack.c.h.b16 %v251
        %v342 = vunpack.c.l.b16 %v252
        %v343 = vunpack.c.h.b16 %v252
        %v344 = vunpack.c.l.b16 %v253
        %v345 = vunpack.c.h.b16 %v253
        %v346 = vunpack.c.l.b16 %v254
        %v347 = vunpack.c.h.b16 %v254
        %v348 = vunpack.c.l.b16 %v255
        %v349 = vunpack.c.h.b16 %v255
        %v350 = vunpack.c.l.b16 %v256
        %v351 = vunpack.c.h.b16 %v256
        %v352 = vunpack.c.l.b16 %v257
        %v353 = vunpack.c.h.b16 %v257
        %v354 = vunpack.c.l.b16 %v258
        %v355 = vunpack.c.h.b16 %v258
        %v356 = vunpack.c.l.b16 %v259
        %v357 = vunpack.c.h.b16 %v259
        %v358 = vunpack.c.l.b16 %v260
        %v359 = vunpack.c.h.b16 %v260
        %v360 = vunpack.c.l.b16 %v261
        %v361 = vunpack.c.h.b16 %v261
        %v362 = vunpack.c.l.b16 %v262
        %v363 = vunpack.c.h.b16 %v262
        %v364 = vunpack.c.l.b16 %v263
        %v365 = vunpack.c.h.b16 %v263
        %v366 = vunpack.c.l.b16 %v264
        %v367 = vunpack.c.h.b16 %v264
        %v368 = vunpack.c.l.b16 %v265
        %v369 = vunpack.c.h.b16 %v265
        %v370 = vunpack.c.l.b16 %v266
        %v371 = vunpack.c.h.b16 %v266
        %v372 = vunpack.c.l.b16 %v267
        %v373 = vunpack.c.h.b16 %v267
        %v374 = vpack.c.b16 %v312, %v310
        %v375 = vpack.c.b16 %v313, %v311
        %v376 = vpack.c.b16 %v316, %v314
        %v377 = vpack.c.b16 %v317, %v315
        %v378 = vpack.c.b16 %v320, %v318
        %v379 = vpack.c.b16 %v321, %v319
        %v380 = vpack.c.b16 %v324, %v322
        %v381 = vpack.c.b16 %v325, %v323
        %v382 = vpack.c.b16 %v328, %v326
        %v383 = vpack.c.b16 %v329, %v327
        %v384 = vpack.c.b16 %v332, %v330
        %v385 = vpack.c.b16 %v333, %v331
        %v386 = vpack.c.b16 %v336, %v334
        %v387 = vpack.c.b16 %v337, %v335
        %v388 = vpack.c.b16 %v340, %v338
        %v389 = vpack.c.b16 %v341, %v339
        %v390 = vpack.c.b16 %v344, %v342
        %v391 = vpack.c.b16 %v345, %v343
        %v392 = vpack.c.b16 %v348, %v346
        %v393 = vpack.c.b16 %v349, %v347
        %v394 = vpack.c.b16 %v352, %v350
        %v395 = vpack.c.b16 %v353, %v351
        %v396 = vpack.c.b16 %v356, %v354
        %v397 = vpack.c.b16 %v357, %v355
        %v398 = vpack.c.b16 %v360, %v358
        %v399 = vpack.c.b16 %v361, %v359
        %v400 = vpack.c.b16 %v364, %v362
        %v401 = vpack.c.b16 %v365, %v363
        %v402 = vpack.c.b16 %v368, %v366
        %v403 = vpack.c.b16 %v369, %v367
        %v404 = vpack.c.b16 %v372, %v370
        %v405 = vpack.c.b16 %v373, %v371
        %438 = vmatprep.subr.bf16.mxu0 %v375
        %439 = vmatpush1.bf16.msra.mxu0 %v374
        %440 = vmatprep.subr.bf16.mxu0 %v377
        %441 = vmatpush1.bf16.msra.mxu0 %v376
        %442 = vmatprep.subr.bf16.mxu0 %v379
        %443 = vmatpush1.bf16.msra.mxu0 %v378
        %444 = vmatprep.subr.bf16.mxu0 %v381
        %445 = vmatpush1.bf16.msra.mxu0 %v380
        %446 = vmatprep.subr.bf16.mxu0 %v383
        %447 = vmatpush1.bf16.msra.mxu0 %v382
        %448 = vmatprep.subr.bf16.mxu0 %v385
        %449 = vmatpush1.bf16.msra.mxu0 %v384
        %450 = vmatprep.subr.bf16.mxu0 %v387
        %451 = vmatpush1.bf16.msra.mxu0 %v386
        %452 = vmatprep.subr.bf16.mxu0 %v389
        %453 = vmatpush1.bf16.msra.mxu0 %v388
        %454 = vmatprep.subr.bf16.mxu0 %v391
        %455 = vmatpush1.bf16.msra.mxu0 %v390
        %456 = vmatprep.subr.bf16.mxu0 %v393
        %457 = vmatpush1.bf16.msra.mxu0 %v392
        %458 = vmatprep.subr.bf16.mxu0 %v395
        %459 = vmatpush1.bf16.msra.mxu0 %v394
        %460 = vmatprep.subr.bf16.mxu0 %v397
        %461 = vmatpush1.bf16.msra.mxu0 %v396
        %462 = vmatprep.subr.bf16.mxu0 %v399
        %463 = vmatpush1.bf16.msra.mxu0 %v398
        %464 = vmatprep.subr.bf16.mxu0 %v401
        %465 = vmatpush1.bf16.msra.mxu0 %v400
        %466 = vmatprep.subr.bf16.mxu0 %v403
        %467 = vmatpush1.bf16.msra.mxu0 %v402
        %468 = vmatprep.subr.bf16.mxu0 %v405
        %469 = vmatpush1.bf16.msra.mxu0 %v404
        %470 = vmatprep.mubr.bf16.mxu0 %v275
        %471 = vmatmul.mubr.bf16.gmra.mrb[0].mxu0 %v274
        %v472 = vpop.f32.mrb[0].mxu0
        %v473 = vadd.f32 0.0, %v472
        %v474 = vpop.f32.mrb[0].mxu0
        %v475 = vadd.f32 0.0, %v474
        %v476 = vpop.f32.mrb[0].mxu0
        %v477 = vadd.f32 0.0, %v476
        %v478 = vpop.f32.mrb[0].mxu0
        %v479 = vadd.f32 0.0, %v478
        %480 = vdwg.mxu0
        %v481 = vld [vmem:[%s232] sm:$0xff]
        %v482 = vld [vmem:[%s232 + $0x8] sm:$0xff]
        %v483 = vunpack.c.l.bf16 %v234
        %v484 = vunpack.c.h.bf16 %v234
        %v485 = vunpack.c.l.bf16 %v235
        %v486 = vunpack.c.h.bf16 %v235
        %488 = vset.pattern.permute.xlu0 0
        %489 = vperm.xlu0 %488, %v481
        %v490 = vpop.permute.xlu0 %489
        %493 = vset.pattern.permute.xlu0 0
        %494 = vperm.xlu0 %493, %v482
        %v495 = vpop.permute.xlu0 %494
        %v497 = vmul.f32 %v490, %v483
        %v498 = vmul.f32 %v490, %v484
        %v499 = vmul.f32 %v495, %v485
        %v500 = vmul.f32 %v495, %v486
        %v501 = vsub.f32 %v473, %v497
        %v502 = vsub.f32 %v475, %v498
        %v503 = vsub.f32 %v477, %v499
        %v504 = vsub.f32 %v479, %v500
        %v505 = vmul.f32 %v501, %v501
        %v506 = vmul.f32 %v502, %v502
        %v507 = vmul.f32 %v503, %v503
        %v508 = vmul.f32 %v504, %v504
        %v509 = vadd.f32 %v505, %v506
        %v510 = vadd.f32 %v507, %v508
        %v511 = vadd.f32 %v509, %v510
        %512 = vst [vmem:[%s219] sm:$0xff] %v511
        %s513 = sand.u32 %s118, 1
        %s514 = scalar_lea.sflag [#allocation4], %s513
        %s515 = sand.u32 %s118, 1
        %s516 = smul.addr %s515, 8
        %s517 = scalar_lea.vmem [#allocation5], %s516
        // Predicated region
        $region37: #{tpu_custom_call.1} parent=31 // pred_check
          %p518 = pneg %p128
        $region38: #{tpu_custom_call.1} parent=31 // pred_check_branch
          %520 = sbr.rel (%p518) target = $region40
        $region39: #{tpu_custom_call.1} parent=31 // pred_region
          %s522 = ssub.s32 128, 128
          %523 = vsyncadd %s514, %s522
          %s524 = sadd.s32 %s23, %s22
          %s525 = smul.addr %s524, 128
          %s526 = scalar_lea.hbm %s3, %s525
          %s528 = sshll.u32 %s517, 4
          %s529 = int_to_ptr.vmem [resolvable:$true] %s528
          %531 = dma.vmem_to_hbm [thread:$0]  %s529, 128, %s526, %s514
        $region40: #{tpu_custom_call.1} parent=31 // pred_fallthru
          _
      $region32: #{tpu_custom_call.1} parent=5 // pred_fallthru
        _
      %p532 = scmp.le.s32.totalorder 2, %s13
      // Predicated region
      $region41: #{tpu_custom_call.1} parent=5 // pred_check
        %p533 = pneg %p532
      $region42: #{tpu_custom_call.1} parent=5 // pred_check_branch
        %535 = sbr.rel (%p533) target = $region44
      $region43: #{tpu_custom_call.1} parent=5 // pred_region
        %s536 = ssub.s32 %s13, 2
        // Predicated region
        $region45: #{tpu_custom_call.1} parent=43 // pred_check
          %p537 = pneg %p134
        $region46: #{tpu_custom_call.1} parent=43 // pred_check_branch
          %539 = sbr.rel (%p537) target = $region48
        $region47: #{tpu_custom_call.1} parent=43 // pred_region
          %s540 = sand.u32 %s119, 1
          %s541 = scalar_lea.sflag [#allocation4], %s540
          %s542 = sand.u32 %s119, 1
          %s543 = smul.addr %s542, 8
          %s544 = scalar_lea.vmem [#allocation5], %s543
          %545 = dma.done %s541, 128
        $region48: #{tpu_custom_call.1} parent=43 // pred_fallthru
          _
      $region44: #{tpu_custom_call.1} parent=5 // pred_fallthru
        _
    $region6: #{tpu_custom_call.1} parent=1 // loop_footer
      %s17 = sadd.s32 1, %s13
    $region7: #{tpu_custom_call.1} parent=1 // loop_footer_branch
      %12 = sbr.rel target = $region3
    $region8: #{tpu_custom_call.1} parent=1 // loop_exit
      _
    %546 = vsyncpa [#allocation3], 1
    %s547 = scalar_lea.sflag [#allocation3], 1
    %548 = vsyncpa %s547, 1
    %549 = vsyncpa [#allocation4], 1
    %s550 = scalar_lea.sflag [#allocation4], 1
    %551 = vsyncpa %s550, 1

</llo_original>
